<compile_context>
chip_gen: v7x
topology: tpu7x:2x2x1
jax: 0.10.0
libtpu: 0.0.40
codegen_flags: <defaults>
</compile_context>

<pallas_src>
import functools
import math

import jax
import jax.numpy as jnp
from jax.experimental import pallas as pl
from jax.experimental.pallas import tpu as pltpu


_VMEM_LIMIT_BYTES = 32 * 1024 * 1024      # explicit scoped-VMEM limit (v7x-safe)
_VMEM_TILE_BUDGET = 12 * 1024 * 1024      # keep live block buffers well under it


# ---------------------------------------------------------------------------
# GELU shared by the Pallas kernels and the pure-JAX reference.
# TODO(synk): torch.nn.GELU() is the exact erf form; the tanh approximation is
# used here (identically in kernels and reference) to stay on universally
# supported Mosaic lowerings (tanh -> EUP).
def _gelu(x):
    c = math.sqrt(2.0 / math.pi)
    return 0.5 * x * (1.0 + jnp.tanh(c * (x + 0.044715 * x * x * x)))


# ---------------------------------------------------------------------------
# Kernel 1: fused series_decomp (moving mean + residual), padding in-kernel.
def _series_decomp_kernel(x_ref, mean_ref, res_ref, pad_ref, *, kernel_size):
    # x_ref   : (b_t, T, c_t)  unpadded input tile
    # mean_ref: (b_t, T, c_t)  moving average output tile
    # res_ref : (b_t, T, c_t)  residual (x - mean) output tile
    # pad_ref : (b_t, T+2*pad, c_t) f32 VMEM scratch for the replicate-padded tile
    pad = (kernel_size - 1) // 2
    b_t, T, c_t = x_ref.shape

    # Single load of the tile; upcast once (bf16 inputs accumulate in f32).
    xv = x_ref[...].astype(jnp.float32)

    # Build the replicate-padded tile in VMEM (no HBM padding copy).
    pad_ref[:, pad:pad + T, :] = xv
    if pad > 0:
        pad_ref[:, 0:pad, :] = jnp.broadcast_to(xv[:, 0:1, :], (b_t, pad, c_t))
        pad_ref[:, pad + T:2 * pad + T, :] = jnp.broadcast_to(
            xv[:, T - 1:T, :], (b_t, pad, c_t))

    # Unrolled windowed sum over the kernel taps (static slices, stride 1).
    acc = jnp.zeros((b_t, T, c_t), jnp.float32)
    for i in range(kernel_size):
        acc = acc + pad_ref[:, i:i + T, :]

    mean = acc * (1.0 / kernel_size)
    mean_ref[...] = mean.astype(mean_ref.dtype)
    res_ref[...] = (xv - mean).astype(res_ref.dtype)   # fused consumer (residual)


def _choose_tiles(B, T, pad, C, itemsize):
    """Pick (b_tile, c_tile): lane-dense channel tiles, blocks sized well inside
    v7x's 64 MiB VMEM, and batch packing to amortize per-grid-step overhead."""
    def bytes_needed(b_tile, c_tile):
        io = 2 * 3 * b_tile * T * c_tile * itemsize       # in + 2 outs, double-buffered
        scratch = b_tile * (T + 2 * pad) * c_tile * 4     # f32 padded scratch
        return io + scratch

    if C % 128 != 0:
        c_tile = C                                        # full dim (block == array dim)
    else:
        c_tile = 128
        for c in range(128, C + 1, 128):
            if C % c == 0 and bytes_needed(1, c) <= _VMEM_TILE_BUDGET:
                c_tile = c
    b_tile = 1
    while b_tile < B and bytes_needed(b_tile * 2, c_tile) <= _VMEM_TILE_BUDGET:
        b_tile *= 2
    return min(b_tile, B), c_tile


def series_decomp_pallas(x, kernel_size):
    """x: [B, T, C] -> (res, moving_mean), matching PyTorch series_decomp."""
    assert kernel_size >= 1 and kernel_size % 2 == 1, "series_decomp needs odd kernel"
    B, T, C = x.shape
    pad = (kernel_size - 1) // 2
    itemsize = jnp.dtype(x.dtype).itemsize
    b_tile, c_tile = _choose_tiles(B, T, pad, C, itemsize)
    grid = (pl.cdiv(B, b_tile), pl.cdiv(C, c_tile))

    kernel = functools.partial(_series_decomp_kernel, kernel_size=kernel_size)
    blk = pl.BlockSpec((b_tile, T, c_tile), lambda b, c: (b, 0, c))

    mean, res = pl.pallas_call(
        kernel,
        out_shape=(jax.ShapeDtypeStruct((B, T, C), x.dtype),
                   jax.ShapeDtypeStruct((B, T, C), x.dtype)),
        grid_spec=pltpu.PrefetchScalarGridSpec(
            num_scalar_prefetch=0,
            grid=grid,
            in_specs=[blk],
            out_specs=[blk, blk],
            scratch_shapes=[pltpu.VMEM((b_tile, T + 2 * pad, c_tile), jnp.float32)],
        ),
        compiler_params=pltpu.CompilerParams(
            dimension_semantics=("parallel", "parallel"),
            vmem_limit_bytes=_VMEM_LIMIT_BYTES,
        ),
    )(x)
    return res, mean


# ---------------------------------------------------------------------------
# Kernel 2: fused Linear -> GELU -> Linear (applied along the last dim).
def _mlp_kernel(x_ref, w1_ref, b1_ref, w2_ref, b2_ref, o_ref):
    x = x_ref[0].astype(jnp.float32)                       # (R, Din)
    h = jnp.dot(x, w1_ref[...].astype(jnp.float32),
                preferred_element_type=jnp.float32) + b1_ref[...].astype(jnp.float32)
    h = _gelu(h)
    y = jnp.dot(h, w2_ref[...].astype(jnp.float32),
                preferred_element_type=jnp.float32) + b2_ref[...].astype(jnp.float32)
    o_ref[0] = y.astype(o_ref.dtype)


def mlp_pallas(x, w1, b1, w2, b2):
    """x: [B, R, Din] -> [B, R, Dout] via Linear(Din,H) -> GELU -> Linear(H,Dout)."""
    B, R, Din = x.shape
    H = w1.shape[1]
    Dout = w2.shape[1]
    return pl.pallas_call(
        _mlp_kernel,
        out_shape=jax.ShapeDtypeStruct((B, R, Dout), x.dtype),
        grid_spec=pltpu.PrefetchScalarGridSpec(
            num_scalar_prefetch=0,
            grid=(B,),
            in_specs=[pl.BlockSpec((1, R, Din), lambda b: (b, 0, 0)),
                      pl.BlockSpec((Din, H), lambda b: (0, 0)),
                      pl.BlockSpec((1, H), lambda b: (0, 0)),
                      pl.BlockSpec((H, Dout), lambda b: (0, 0)),
                      pl.BlockSpec((1, Dout), lambda b: (0, 0))],
            out_specs=pl.BlockSpec((1, R, Dout), lambda b: (b, 0, 0)),
        ),
        compiler_params=pltpu.CompilerParams(
            dimension_semantics=("parallel",),
            vmem_limit_bytes=_VMEM_LIMIT_BYTES,
        ),
    )(x, w1, b1, w2, b2)


# ---------------------------------------------------------------------------
# Pure-JAX references (mirror the PyTorch modules; used for verification).
def _series_decomp_ref(x, kernel_size):
    B, T, C = x.shape
    pad = (kernel_size - 1) // 2
    front = jnp.broadcast_to(x[:, 0:1, :], (B, pad, C))
    end = jnp.broadcast_to(x[:, -1:, :], (B, pad, C))
    xp = jnp.concatenate([front, x, end], axis=1)
    windows = jnp.stack([xp[:, j:j + kernel_size, :] for j in range(T)], axis=1)
    mean = windows.mean(axis=2)
    return x - mean, mean


def _mlp_ref(x, w1, b1, w2, b2):
    h = jnp.dot(x.astype(jnp.float32), w1.astype(jnp.float32)) + b1.astype(jnp.float32)
    h = _gelu(h)
    y = jnp.dot(h, w2.astype(jnp.float32)) + b2.astype(jnp.float32)
    return y.astype(x.dtype)


# ---------------------------------------------------------------------------
# PastDecomposableMixing forward (shared structure; swap decomp/mlp impls).
def _forward(params, x_list, *, kernel_size, channel_independence, decomp_fn, mlp_fn):
    length_list = [x.shape[1] for x in x_list]

    season_list, trend_list = [], []
    for x in x_list:
        season, trend = decomp_fn(x, kernel_size)          # (res, moving_mean)
        if not channel_independence:
            season = mlp_fn(season, *params["cross"])
            trend = mlp_fn(trend, *params["cross"])
        season_list.append(jnp.transpose(season, (0, 2, 1)))   # [B, C, T]
        trend_list.append(jnp.transpose(trend, (0, 2, 1)))

    n = len(x_list)

    # MultiScaleSeasonMixing (bottom-up)
    out_high = season_list[0]
    out_low = season_list[1]
    out_season_list = [jnp.transpose(out_high, (0, 2, 1))]
    for i in range(n - 1):
        out_low_res = mlp_fn(out_high, *params["down"][i])
        out_low = out_low + out_low_res
        out_high = out_low
        if i + 2 <= n - 1:
            out_low = season_list[i + 2]
        out_season_list.append(jnp.transpose(out_high, (0, 2, 1)))

    # MultiScaleTrendMixing (top-down)
    rev = list(reversed(trend_list))
    out_low = rev[0]
    out_high = rev[1]
    out_trend_list = [jnp.transpose(out_low, (0, 2, 1))]
    for i in range(n - 1):
        out_high_res = mlp_fn(out_low, *params["up"][i])
        out_high = out_high + out_high_res
        out_low = out_high
        if i + 2 <= n - 1:
            out_high = rev[i + 2]
        out_trend_list.append(jnp.transpose(out_low, (0, 2, 1)))
    out_trend_list.reverse()

    out_list = []
    for ori, o_season, o_trend, length in zip(x_list, out_season_list,
                                              out_trend_list, length_list):
        out = o_season + o_trend
        if channel_independence:
            out = ori + mlp_fn(out, *params["out_cross"])
        out_list.append(out[:, :length, :])
    return out_list


def past_decomposable_mixing(params, x_list, *, kernel_size, channel_independence=True):
    return _forward(params, x_list, kernel_size=kernel_size,
                    channel_independence=channel_independence,
                    decomp_fn=series_decomp_pallas, mlp_fn=mlp_pallas)


def past_decomposable_mixing_ref(params, x_list, *, kernel_size, channel_independence=True):
    return _forward(params, x_list, kernel_size=kernel_size,
                    channel_independence=channel_independence,
                    decomp_fn=_series_decomp_ref, mlp_fn=_mlp_ref)


# ---------------------------------------------------------------------------
# Parameter init (PyTorch nn.Linear-style uniform init; weights are [in, out]).
def _linear_init(key, fan_in, fan_out):
    kw, kb = jax.random.split(key)
    bound = 1.0 / math.sqrt(fan_in)
    w = jax.random.uniform(kw, (fan_in, fan_out), jnp.float32, -bound, bound)
    b = jax.random.uniform(kb, (1, fan_out), jnp.float32, -bound, bound)
    return w, b


def init_params(key, lens, d_model, d_ff):
    L = len(lens) - 1
    keys = jax.random.split(key, 2 * L + 2)
    down = []
    for i in range(L):
        k1, k2 = jax.random.split(keys[i])
        w1, b1 = _linear_init(k1, lens[i], lens[i + 1])
        w2, b2 = _linear_init(k2, lens[i + 1], lens[i + 1])
        down.append((w1, b1, w2, b2))
    up = []
    for j, i in enumerate(reversed(range(L))):              # module-list order
        k1, k2 = jax.random.split(keys[L + j])
        w1, b1 = _linear_init(k1, lens[i + 1], lens[i])
        w2, b2 = _linear_init(k2, lens[i], lens[i])
        up.append((w1, b1, w2, b2))
    k1, k2 = jax.random.split(keys[2 * L])
    ow1, ob1 = _linear_init(k1, d_model, d_ff)
    ow2, ob2 = _linear_init(k2, d_ff, d_model)
    k1, k2 = jax.random.split(keys[2 * L + 1])
    cw1, cb1 = _linear_init(k1, d_model, d_ff)
    cw2, cb2 = _linear_init(k2, d_ff, d_model)
    return {"down": down, "up": up,
            "out_cross": (ow1, ob1, ow2, ob2),
            "cross": (cw1, cb1, cw2, cb2)}


# ---------------------------------------------------------------------------
if __name__ == "__main__":
    key = jax.random.PRNGKey(0)

    # Small config consistent with TimeMixer's PastDecomposableMixing.
    B, seq_len, d_model, d_ff = 2, 32, 32, 64
    down_sampling_window, down_sampling_layers = 2, 2
    moving_avg_kernel = 25                     # TimeMixer default (odd)
    channel_independence = True

    lens = [seq_len // down_sampling_window ** i for i in range(down_sampling_layers + 1)]

    key, *xkeys = jax.random.split(key, len(lens) + 1)
    x_list = [jax.random.normal(k, (B, s, d_model), jnp.float32)
              for k, s in zip(xkeys, lens)]

    key, pkey = jax.random.split(key)
    params = init_params(pkey, lens, d_model, d_ff)

    # 1) Tight check of the fused decomposition kernel (no matmuls involved).
    for x in x_list:
        res, mean = series_decomp_pallas(x, moving_avg_kernel)
        res = jax.block_until_ready(res)
        mean = jax.block_until_ready(mean)
        res_r, mean_r = _series_decomp_ref(x, moving_avg_kernel)
        assert jnp.allclose(mean, mean_r, atol=1e-5, rtol=1e-5), "moving_mean mismatch"
        assert jnp.allclose(res, res_r, atol=1e-5, rtol=1e-5), "residual mismatch"

    # 2) Full PastDecomposableMixing forward (Pallas kernels vs pure-JAX ref).
    out_list = past_decomposable_mixing(params, x_list,
                                        kernel_size=moving_avg_kernel,
                                        channel_independence=channel_independence)
    out_list = [jax.block_until_ready(o) for o in out_list]
    ref_list = past_decomposable_mixing_ref(params, x_list,
                                            kernel_size=moving_avg_kernel,
                                            channel_independence=channel_independence)
    # Tolerance covers MXU default-precision f32 matmuls inside the Pallas
    # kernels vs XLA's default dot precision in the reference.
    for o, r in zip(out_list, ref_list):
        assert o.shape == r.shape, (o.shape, r.shape)
        assert jnp.allclose(o, r, atol=3e-2, rtol=3e-2), "forward mismatch vs reference"

    print("KERNEL_OK")
</pallas_src>

<mosaic_0001>
module attributes {stable_mosaic.version = 11 : i64} {
  func.func @_series_decomp_kernel(%arg0: i32, %arg1: i32, %arg2: memref<2x32x32xf32, #tpu.memory_space<vmem>>, %arg3: memref<2x32x32xf32, #tpu.memory_space<vmem>>, %arg4: memref<2x32x32xf32, #tpu.memory_space<vmem>>, %arg5: memref<2x56x32xf32, #tpu.memory_space<vmem>>) attributes {dimension_semantics = [#tpu.dimension_semantics<parallel>, #tpu.dimension_semantics<parallel>], iteration_bounds = array<i64: 1, 1>, scalar_prefetch = 0 : i64, scratch_operands = 1 : i64, tpu.core_type = #tpu.core_type<tc>, window_params = [{transform_indices = @transform_0, window_bounds = array<i64: 2, 32, 32>}, {transform_indices = @transform_1, window_bounds = array<i64: 2, 32, 32>}, {transform_indices = @transform_2, window_bounds = array<i64: 2, 32, 32>}]} {
    %c0 = arith.constant 0 : index
    %c0_0 = arith.constant 0 : index
    %c0_1 = arith.constant 0 : index
    %0 = vector.load %arg2[%c0, %c0_0, %c0_1] : memref<2x32x32xf32, #tpu.memory_space<vmem>>, vector<2x32x32xf32>
    %c0_2 = arith.constant 0 : index
    %c12 = arith.constant 12 : index
    %c0_3 = arith.constant 0 : index
    %1 = vector.load %arg5[%c0_2, %c12, %c0_3] : memref<2x56x32xf32, #tpu.memory_space<vmem>>, vector<2x32x32xf32>
    tpu.vector_store %arg5[%c0_2, %c12, %c0_3], %0 {strides = array<i32>} : memref<2x56x32xf32, #tpu.memory_space<vmem>>, vector<2x32x32xf32>,
    %2 = vector.extract_strided_slice %0 {offsets = [0, 0, 0], sizes = [2, 1, 32], strides = [1, 1, 1]} : vector<2x32x32xf32> to vector<2x1x32xf32>
    %3 = vector.shape_cast %2 : vector<2x1x32xf32> to vector<2x1x32xf32>
    %4 = vector.broadcast %3 : vector<2x1x32xf32> to vector<2x12x32xf32>
    %c0_4 = arith.constant 0 : index
    %c0_5 = arith.constant 0 : index
    %c0_6 = arith.constant 0 : index
    %5 = vector.load %arg5[%c0_4, %c0_5, %c0_6] : memref<2x56x32xf32, #tpu.memory_space<vmem>>, vector<2x12x32xf32>
    tpu.vector_store %arg5[%c0_4, %c0_5, %c0_6], %4 {strides = array<i32>} : memref<2x56x32xf32, #tpu.memory_space<vmem>>, vector<2x12x32xf32>,
    %6 = vector.extract_strided_slice %0 {offsets = [0, 31, 0], sizes = [2, 1, 32], strides = [1, 1, 1]} : vector<2x32x32xf32> to vector<2x1x32xf32>
    %7 = vector.shape_cast %6 : vector<2x1x32xf32> to vector<2x1x32xf32>
    %8 = vector.broadcast %7 : vector<2x1x32xf32> to vector<2x12x32xf32>
    %c0_7 = arith.constant 0 : index
    %c44 = arith.constant 44 : index
    %c0_8 = arith.constant 0 : index
    %9 = vector.load %arg5[%c0_7, %c44, %c0_8] : memref<2x56x32xf32, #tpu.memory_space<vmem>>, vector<2x12x32xf32>
    tpu.vector_store %arg5[%c0_7, %c44, %c0_8], %8 {strides = array<i32>} : memref<2x56x32xf32, #tpu.memory_space<vmem>>, vector<2x12x32xf32>,
    %cst = arith.constant 0.000000e+00 : f32
    %10 = vector.broadcast %cst : f32 to vector<2x32x32xf32>
    %c0_9 = arith.constant 0 : index
    %c0_10 = arith.constant 0 : index
    %c0_11 = arith.constant 0 : index
    %11 = vector.load %arg5[%c0_9, %c0_10, %c0_11] : memref<2x56x32xf32, #tpu.memory_space<vmem>>, vector<2x32x32xf32>
    %12 = arith.addf %10, %11 : vector<2x32x32xf32>
    %c0_12 = arith.constant 0 : index
    %c1 = arith.constant 1 : index
    %c0_13 = arith.constant 0 : index
    %13 = vector.load %arg5[%c0_12, %c1, %c0_13] : memref<2x56x32xf32, #tpu.memory_space<vmem>>, vector<2x32x32xf32>
    %14 = arith.addf %12, %13 : vector<2x32x32xf32>
    %c0_14 = arith.constant 0 : index
    %c2 = arith.constant 2 : index
    %c0_15 = arith.constant 0 : index
    %15 = vector.load %arg5[%c0_14, %c2, %c0_15] : memref<2x56x32xf32, #tpu.memory_space<vmem>>, vector<2x32x32xf32>
    %16 = arith.addf %14, %15 : vector<2x32x32xf32>
    %c0_16 = arith.constant 0 : index
    %c3 = arith.constant 3 : index
    %c0_17 = arith.constant 0 : index
    %17 = vector.load %arg5[%c0_16, %c3, %c0_17] : memref<2x56x32xf32, #tpu.memory_space<vmem>>, vector<2x32x32xf32>
    %18 = arith.addf %16, %17 : vector<2x32x32xf32>
    %c0_18 = arith.constant 0 : index
    %c4 = arith.constant 4 : index
    %c0_19 = arith.constant 0 : index
    %19 = vector.load %arg5[%c0_18, %c4, %c0_19] : memref<2x56x32xf32, #tpu.memory_space<vmem>>, vector<2x32x32xf32>
    %20 = arith.addf %18, %19 : vector<2x32x32xf32>
    %c0_20 = arith.constant 0 : index
    %c5 = arith.constant 5 : index
    %c0_21 = arith.constant 0 : index
    %21 = vector.load %arg5[%c0_20, %c5, %c0_21] : memref<2x56x32xf32, #tpu.memory_space<vmem>>, vector<2x32x32xf32>
    %22 = arith.addf %20, %21 : vector<2x32x32xf32>
    %c0_22 = arith.constant 0 : index
    %c6 = arith.constant 6 : index
    %c0_23 = arith.constant 0 : index
    %23 = vector.load %arg5[%c0_22, %c6, %c0_23] : memref<2x56x32xf32, #tpu.memory_space<vmem>>, vector<2x32x32xf32>
    %24 = arith.addf %22, %23 : vector<2x32x32xf32>
    %c0_24 = arith.constant 0 : index
    %c7 = arith.constant 7 : index
    %c0_25 = arith.constant 0 : index
    %25 = vector.load %arg5[%c0_24, %c7, %c0_25] : memref<2x56x32xf32, #tpu.memory_space<vmem>>, vector<2x32x32xf32>
    %26 = arith.addf %24, %25 : vector<2x32x32xf32>
    %c0_26 = arith.constant 0 : index
    %c8 = arith.constant 8 : index
    %c0_27 = arith.constant 0 : index
    %27 = vector.load %arg5[%c0_26, %c8, %c0_27] : memref<2x56x32xf32, #tpu.memory_space<vmem>>, vector<2x32x32xf32>
    %28 = arith.addf %26, %27 : vector<2x32x32xf32>
    %c0_28 = arith.constant 0 : index
    %c9 = arith.constant 9 : index
    %c0_29 = arith.constant 0 : index
    %29 = vector.load %arg5[%c0_28, %c9, %c0_29] : memref<2x56x32xf32, #tpu.memory_space<vmem>>, vector<2x32x32xf32>
    %30 = arith.addf %28, %29 : vector<2x32x32xf32>
    %c0_30 = arith.constant 0 : index
    %c10 = arith.constant 10 : index
    %c0_31 = arith.constant 0 : index
    %31 = vector.load %arg5[%c0_30, %c10, %c0_31] : memref<2x56x32xf32, #tpu.memory_space<vmem>>, vector<2x32x32xf32>
    %32 = arith.addf %30, %31 : vector<2x32x32xf32>
    %c0_32 = arith.constant 0 : index
    %c11 = arith.constant 11 : index
    %c0_33 = arith.constant 0 : index
    %33 = vector.load %arg5[%c0_32, %c11, %c0_33] : memref<2x56x32xf32, #tpu.memory_space<vmem>>, vector<2x32x32xf32>
    %34 = arith.addf %32, %33 : vector<2x32x32xf32>
    %c0_34 = arith.constant 0 : index
    %c12_35 = arith.constant 12 : index
    %c0_36 = arith.constant 0 : index
    %35 = vector.load %arg5[%c0_34, %c12_35, %c0_36] : memref<2x56x32xf32, #tpu.memory_space<vmem>>, vector<2x32x32xf32>
    %36 = arith.addf %34, %35 : vector<2x32x32xf32>
    %c0_37 = arith.constant 0 : index
    %c13 = arith.constant 13 : index
    %c0_38 = arith.constant 0 : index
    %37 = vector.load %arg5[%c0_37, %c13, %c0_38] : memref<2x56x32xf32, #tpu.memory_space<vmem>>, vector<2x32x32xf32>
    %38 = arith.addf %36, %37 : vector<2x32x32xf32>
    %c0_39 = arith.constant 0 : index
    %c14 = arith.constant 14 : index
    %c0_40 = arith.constant 0 : index
    %39 = vector.load %arg5[%c0_39, %c14, %c0_40] : memref<2x56x32xf32, #tpu.memory_space<vmem>>, vector<2x32x32xf32>
    %40 = arith.addf %38, %39 : vector<2x32x32xf32>
    %c0_41 = arith.constant 0 : index
    %c15 = arith.constant 15 : index
    %c0_42 = arith.constant 0 : index
    %41 = vector.load %arg5[%c0_41, %c15, %c0_42] : memref<2x56x32xf32, #tpu.memory_space<vmem>>, vector<2x32x32xf32>
    %42 = arith.addf %40, %41 : vector<2x32x32xf32>
    %c0_43 = arith.constant 0 : index
    %c16 = arith.constant 16 : index
    %c0_44 = arith.constant 0 : index
    %43 = vector.load %arg5[%c0_43, %c16, %c0_44] : memref<2x56x32xf32, #tpu.memory_space<vmem>>, vector<2x32x32xf32>
    %44 = arith.addf %42, %43 : vector<2x32x32xf32>
    %c0_45 = arith.constant 0 : index
    %c17 = arith.constant 17 : index
    %c0_46 = arith.constant 0 : index
    %45 = vector.load %arg5[%c0_45, %c17, %c0_46] : memref<2x56x32xf32, #tpu.memory_space<vmem>>, vector<2x32x32xf32>
    %46 = arith.addf %44, %45 : vector<2x32x32xf32>
    %c0_47 = arith.constant 0 : index
    %c18 = arith.constant 18 : index
    %c0_48 = arith.constant 0 : index
    %47 = vector.load %arg5[%c0_47, %c18, %c0_48] : memref<2x56x32xf32, #tpu.memory_space<vmem>>, vector<2x32x32xf32>
    %48 = arith.addf %46, %47 : vector<2x32x32xf32>
    %c0_49 = arith.constant 0 : index
    %c19 = arith.constant 19 : index
    %c0_50 = arith.constant 0 : index
    %49 = vector.load %arg5[%c0_49, %c19, %c0_50] : memref<2x56x32xf32, #tpu.memory_space<vmem>>, vector<2x32x32xf32>
    %50 = arith.addf %48, %49 : vector<2x32x32xf32>
    %c0_51 = arith.constant 0 : index
    %c20 = arith.constant 20 : index
    %c0_52 = arith.constant 0 : index
    %51 = vector.load %arg5[%c0_51, %c20, %c0_52] : memref<2x56x32xf32, #tpu.memory_space<vmem>>, vector<2x32x32xf32>
    %52 = arith.addf %50, %51 : vector<2x32x32xf32>
    %c0_53 = arith.constant 0 : index
    %c21 = arith.constant 21 : index
    %c0_54 = arith.constant 0 : index
    %53 = vector.load %arg5[%c0_53, %c21, %c0_54] : memref<2x56x32xf32, #tpu.memory_space<vmem>>, vector<2x32x32xf32>
    %54 = arith.addf %52, %53 : vector<2x32x32xf32>
    %c0_55 = arith.constant 0 : index
    %c22 = arith.constant 22 : index
    %c0_56 = arith.constant 0 : index
    %55 = vector.load %arg5[%c0_55, %c22, %c0_56] : memref<2x56x32xf32, #tpu.memory_space<vmem>>, vector<2x32x32xf32>
    %56 = arith.addf %54, %55 : vector<2x32x32xf32>
    %c0_57 = arith.constant 0 : index
    %c23 = arith.constant 23 : index
    %c0_58 = arith.constant 0 : index
    %57 = vector.load %arg5[%c0_57, %c23, %c0_58] : memref<2x56x32xf32, #tpu.memory_space<vmem>>, vector<2x32x32xf32>
    %58 = arith.addf %56, %57 : vector<2x32x32xf32>
    %c0_59 = arith.constant 0 : index
    %c24 = arith.constant 24 : index
    %c0_60 = arith.constant 0 : index
    %59 = vector.load %arg5[%c0_59, %c24, %c0_60] : memref<2x56x32xf32, #tpu.memory_space<vmem>>, vector<2x32x32xf32>
    %60 = arith.addf %58, %59 : vector<2x32x32xf32>
    %cst_61 = arith.constant 4.000000e-02 : f32
    %61 = vector.broadcast %cst_61 : f32 to vector<2x32x32xf32>
    %62 = arith.mulf %60, %61 : vector<2x32x32xf32>
    %c0_62 = arith.constant 0 : index
    %c0_63 = arith.constant 0 : index
    %c0_64 = arith.constant 0 : index
    %63 = vector.load %arg3[%c0_62, %c0_63, %c0_64] : memref<2x32x32xf32, #tpu.memory_space<vmem>>, vector<2x32x32xf32>
    tpu.vector_store %arg3[%c0_62, %c0_63, %c0_64], %62 {strides = array<i32>} : memref<2x32x32xf32, #tpu.memory_space<vmem>>, vector<2x32x32xf32>,
    %64 = arith.subf %0, %62 : vector<2x32x32xf32>
    %c0_65 = arith.constant 0 : index
    %c0_66 = arith.constant 0 : index
    %c0_67 = arith.constant 0 : index
    %65 = vector.load %arg4[%c0_65, %c0_66, %c0_67] : memref<2x32x32xf32, #tpu.memory_space<vmem>>, vector<2x32x32xf32>
    tpu.vector_store %arg4[%c0_65, %c0_66, %c0_67], %64 {strides = array<i32>} : memref<2x32x32xf32, #tpu.memory_space<vmem>>, vector<2x32x32xf32>,
    return
  }
  func.func @transform_0(%arg0: i32, %arg1: i32) -> (i32, i32, i32) {
    %c0_i32 = arith.constant 0 : i32
    %c0_i32_0 = arith.constant 0 : i32
    return %arg0, %c0_i32, %arg1 : i32, i32, i32
  }
  func.func @transform_1(%arg0: i32, %arg1: i32) -> (i32, i32, i32) {
    %c0_i32 = arith.constant 0 : i32
    %c0_i32_0 = arith.constant 0 : i32
    return %arg0, %c0_i32, %arg1 : i32, i32, i32
  }
  func.func @transform_2(%arg0: i32, %arg1: i32) -> (i32, i32, i32) {
    %c0_i32 = arith.constant 0 : i32
    %c0_i32_0 = arith.constant 0 : i32
    return %arg0, %c0_i32, %arg1 : i32, i32, i32
  }
}

</mosaic_0001>

<llo_original>
// kernel: tpu_custom_call.1
$region0: #{tpu_custom_call.1}
  #allocation0 [shape = 'u32[]', space=smem, size = 0x4, offset = 0x4, fixed_abs, tag = 'smem constant byte address 0x4 - core index']
  #allocation1 [shape = 'u32[144,128]{1,0:T(1,128)}', space=vmem, size = 0x12000, scoped, tag = 'internal scratch']
  #allocation2 [shape = 'f32[2,56,32]{2,1,0:T(8,128)}', space=vmem, size = 0xe000, scoped, tag = 'scratch operand']
  %s0 = inlined_call_operand.hbm [shape: f32[2,32,32], index: 0, kind: input, shape index: {}]
  %s1 = inlined_call_operand.hbm [shape: f32[2,32,32], index: 1, kind: output, shape index: {0}]
  %s2 = inlined_call_operand.hbm [shape: f32[2,32,32], index: 2, kind: output, shape index: {1}]
  %3 = xla_tuple %s1, %s2
  %s4 = sld [smem:[#allocation0]]
  $region26: #{tpu_custom_call.1} parent=0
    _
  %s6 = ssub.s32 1, %s4
  %s7 = scalar_select 0, %s6, %s4
  $region1: #{tpu_custom_call.1} parent=0
    #allocation3 [shape = 'u8[32768]{0}', space=vmem, size = 0x8000, scoped, tag = 'input window, operand 0, single buffered']
    #allocation4 [shape = 's32[1]{0}', space=sflag, size = 0x4, scoped, tag = 'scoped memory for tpu_custom_call.1']
    #allocation5 [shape = 's32[1]{0}', space=sflag, size = 0x4, scoped, tag = 'scoped memory for tpu_custom_call.1']
    #allocation6 [shape = 'u8[32768]{0}', space=vmem, size = 0x8000, scoped, tag = 'output window, operand 0, single buffered']
    #allocation7 [shape = 'u8[32768]{0}', space=vmem, size = 0x8000, scoped, tag = 'output window, operand 1, single buffered']
    #allocation8 [shape = 's32[1]{0}', space=sflag, size = 0x4, scoped, tag = 'scoped memory for tpu_custom_call.1']
    %8 = vsyncpa [#allocation4], 0
    %9 = vsyncpa [#allocation5], 0
    %10 = vsyncpa [#allocation8], 0
    // Predicated region
    $region2: #{tpu_custom_call.1} parent=1 // pred_check
      _
    $region3: #{tpu_custom_call.1} parent=1 // pred_check_branch
      %12 = sbr.rel (0) target = $region5
    $region4: #{tpu_custom_call.1} parent=1 // pred_region
      %s14 = ssub.s32 1024, 1024
      %15 = vsyncadd [#allocation4], %s14
      %s16 = sshll.u32 [#allocation3], 4
      %s17 = int_to_ptr.vmem [resolvable:$true] %s16
      %22 = dma.hbm_to_vmem [thread:$0]  %s0, 1024, %s17, [#allocation4], 128, 128, 8
    $region5: #{tpu_custom_call.1} parent=1 // pred_fallthru
      _
    // Predicated region
    $region6: #{tpu_custom_call.1} parent=1 // pred_check
      _
    $region7: #{tpu_custom_call.1} parent=1 // pred_check_branch
      %24 = sbr.rel (0) target = $region9
    $region8: #{tpu_custom_call.1} parent=1 // pred_region
      %25 = dma.done [#allocation4], 1024
    $region9: #{tpu_custom_call.1} parent=1 // pred_fallthru
      _
    %v26 = vld [vmem:[#allocation3] sm:$0xff]
    %v27 = vld [vmem:[#allocation3 + $0x8] sm:$0xff]
    %v28 = vld [vmem:[#allocation3 + $0x10] sm:$0xff]
    %v29 = vld [vmem:[#allocation3 + $0x18] sm:$0xff]
    %v30 = vld [vmem:[#allocation3 + $0x20] sm:$0xff]
    %v31 = vld [vmem:[#allocation3 + $0x28] sm:$0xff]
    %v32 = vld [vmem:[#allocation3 + $0x30] sm:$0xff]
    %v33 = vld [vmem:[#allocation3 + $0x38] sm:$0xff]
    %vm34 = vcmask 261120
    %35 = vst.msk [vmem:[#allocation2 + $0xc] sm:$0xff] %vm34, %v26
    %36 = vst.msk [vmem:[#allocation2 + $0x14] sm:$0xff] %vm34, %v27
    %37 = vst.msk [vmem:[#allocation2 + $0x1c] sm:$0xff] %vm34, %v28
    %38 = vst.msk [vmem:[#allocation2 + $0x24] sm:$0xff] %vm34, %v29
    %39 = vst.msk [vmem:[#allocation2 + $0x44] sm:$0xff] %vm34, %v30
    %40 = vst.msk [vmem:[#allocation2 + $0x4c] sm:$0xff] %vm34, %v31
    %41 = vst.msk [vmem:[#allocation2 + $0x54] sm:$0xff] %vm34, %v32
    %42 = vst.msk [vmem:[#allocation2 + $0x5c] sm:$0xff] %vm34, %v33
    %v43 = vlaneseq
    %v44 = vshrl.u32 %v43, 7
    %v45 = vsub.s32 0, %v44
    %v46 = vrot.slane %v26, %v45
    %v47 = vlaneseq
    %v48 = vshrl.u32 %v47, 7
    %v49 = vsub.s32 0, %v48
    %v50 = vrot.slane %v30, %v49
    %51 = vst.msk [vmem:[#allocation2] sm:$0xff] %vm34, %v46
    %vm52 = vcmask 257024
    %53 = vst.msk [vmem:[#allocation2 + $0x8] sm:$0xf] %vm52, %v46
    %54 = vst.msk [vmem:[#allocation2 + $0x38] sm:$0xff] %vm34, %v50
    %55 = vst.msk [vmem:[#allocation2 + $0x40] sm:$0xf] %vm52, %v50
    %v56 = vlaneseq
    %v57 = vshrl.u32 %v56, 7
    %v58 = vsub.s32 7, %v57
    %v59 = vrot.slane %v29, %v58
    %v60 = vlaneseq
    %v61 = vshrl.u32 %v60, 7
    %v62 = vsub.s32 7, %v61
    %v63 = vrot.slane %v33, %v62
    %64 = vst.msk [vmem:[#allocation2 + $0x2c] sm:$0xff] %vm34, %v59
    %65 = vst.msk [vmem:[#allocation2 + $0x34] sm:$0xf] %vm52, %v59
    %66 = vst.msk [vmem:[#allocation2 + $0x64] sm:$0xff] %vm34, %v63
    %67 = vst.msk [vmem:[#allocation2 + $0x6c] sm:$0xf] %vm52, %v63
    %v68 = vld [vmem:[#allocation2] sm:$0xff]
    %v69 = vld [vmem:[#allocation2 + $0x8] sm:$0xff]
    %v70 = vld [vmem:[#allocation2 + $0x10] sm:$0xff]
    %v71 = vld [vmem:[#allocation2 + $0x18] sm:$0xff]
    %v72 = vld [vmem:[#allocation2 + $0x38] sm:$0xff]
    %v73 = vld [vmem:[#allocation2 + $0x40] sm:$0xff]
    %v74 = vld [vmem:[#allocation2 + $0x48] sm:$0xff]
    %v75 = vld [vmem:[#allocation2 + $0x50] sm:$0xff]
    %v76 = vadd.f32 %v68, 0.0
    %v77 = vadd.f32 %v69, 0.0
    %v78 = vadd.f32 %v70, 0.0
    %v79 = vadd.f32 %v71, 0.0
    %v80 = vadd.f32 %v72, 0.0
    %v81 = vadd.f32 %v73, 0.0
    %v82 = vadd.f32 %v74, 0.0
    %v83 = vadd.f32 %v75, 0.0
    %v84 = vld [vmem:[#allocation2 + $0x1] sm:$0xff]
    %v85 = vld [vmem:[#allocation2 + $0x9] sm:$0xff]
    %v86 = vld [vmem:[#allocation2 + $0x11] sm:$0xff]
    %v87 = vld [vmem:[#allocation2 + $0x19] sm:$0xff]
    %v88 = vld [vmem:[#allocation2 + $0x39] sm:$0xff]
    %v89 = vld [vmem:[#allocation2 + $0x41] sm:$0xff]
    %v90 = vld [vmem:[#allocation2 + $0x49] sm:$0xff]
    %v91 = vld [vmem:[#allocation2 + $0x51] sm:$0xff]
    %v92 = vadd.f32 %v76, %v84
    %v93 = vadd.f32 %v77, %v85
    %v94 = vadd.f32 %v78, %v86
    %v95 = vadd.f32 %v79, %v87
    %v96 = vadd.f32 %v80, %v88
    %v97 = vadd.f32 %v81, %v89
    %v98 = vadd.f32 %v82, %v90
    %v99 = vadd.f32 %v83, %v91
    %v100 = vld [vmem:[#allocation2 + $0x2] sm:$0xff]
    %v101 = vld [vmem:[#allocation2 + $0xa] sm:$0xff]
    %v102 = vld [vmem:[#allocation2 + $0x12] sm:$0xff]
    %v103 = vld [vmem:[#allocation2 + $0x1a] sm:$0xff]
    %v104 = vld [vmem:[#allocation2 + $0x3a] sm:$0xff]
    %v105 = vld [vmem:[#allocation2 + $0x42] sm:$0xff]
    %v106 = vld [vmem:[#allocation2 + $0x4a] sm:$0xff]
    %v107 = vld [vmem:[#allocation2 + $0x52] sm:$0xff]
    %v108 = vadd.f32 %v92, %v100
    %v109 = vadd.f32 %v93, %v101
    %v110 = vadd.f32 %v94, %v102
    %v111 = vadd.f32 %v95, %v103
    %v112 = vadd.f32 %v96, %v104
    %v113 = vadd.f32 %v97, %v105
    %v114 = vadd.f32 %v98, %v106
    %v115 = vadd.f32 %v99, %v107
    %v116 = vld [vmem:[#allocation2 + $0x3] sm:$0xff]
    %v117 = vld [vmem:[#allocation2 + $0xb] sm:$0xff]
    %v118 = vld [vmem:[#allocation2 + $0x13] sm:$0xff]
    %v119 = vld [vmem:[#allocation2 + $0x1b] sm:$0xff]
    %v120 = vld [vmem:[#allocation2 + $0x3b] sm:$0xff]
    %v121 = vld [vmem:[#allocation2 + $0x43] sm:$0xff]
    %v122 = vld [vmem:[#allocation2 + $0x4b] sm:$0xff]
    %v123 = vld [vmem:[#allocation2 + $0x53] sm:$0xff]
    %v124 = vadd.f32 %v108, %v116
    %v125 = vadd.f32 %v109, %v117
    %v126 = vadd.f32 %v110, %v118
    %v127 = vadd.f32 %v111, %v119
    %v128 = vadd.f32 %v112, %v120
    %v129 = vadd.f32 %v113, %v121
    %v130 = vadd.f32 %v114, %v122
    %v131 = vadd.f32 %v115, %v123
    %v132 = vld [vmem:[#allocation2 + $0x4] sm:$0xff]
    %v133 = vld [vmem:[#allocation2 + $0xc] sm:$0xff]
    %v134 = vld [vmem:[#allocation2 + $0x14] sm:$0xff]
    %v135 = vld [vmem:[#allocation2 + $0x1c] sm:$0xff]
    %v136 = vld [vmem:[#allocation2 + $0x3c] sm:$0xff]
    %v137 = vld [vmem:[#allocation2 + $0x44] sm:$0xff]
    %v138 = vld [vmem:[#allocation2 + $0x4c] sm:$0xff]
    %v139 = vld [vmem:[#allocation2 + $0x54] sm:$0xff]
    %v140 = vadd.f32 %v124, %v132
    %v141 = vadd.f32 %v125, %v133
    %v142 = vadd.f32 %v126, %v134
    %v143 = vadd.f32 %v127, %v135
    %v144 = vadd.f32 %v128, %v136
    %v145 = vadd.f32 %v129, %v137
    %v146 = vadd.f32 %v130, %v138
    %v147 = vadd.f32 %v131, %v139
    %v148 = vld [vmem:[#allocation2 + $0x5] sm:$0xff]
    %v149 = vld [vmem:[#allocation2 + $0xd] sm:$0xff]
    %v150 = vld [vmem:[#allocation2 + $0x15] sm:$0xff]
    %v151 = vld [vmem:[#allocation2 + $0x1d] sm:$0xff]
    %v152 = vld [vmem:[#allocation2 + $0x3d] sm:$0xff]
    %v153 = vld [vmem:[#allocation2 + $0x45] sm:$0xff]
    %v154 = vld [vmem:[#allocation2 + $0x4d] sm:$0xff]
    %v155 = vld [vmem:[#allocation2 + $0x55] sm:$0xff]
    %v156 = vadd.f32 %v140, %v148
    %v157 = vadd.f32 %v141, %v149
    %v158 = vadd.f32 %v142, %v150
    %v159 = vadd.f32 %v143, %v151
    %v160 = vadd.f32 %v144, %v152
    %v161 = vadd.f32 %v145, %v153
    %v162 = vadd.f32 %v146, %v154
    %v163 = vadd.f32 %v147, %v155
    %v164 = vld [vmem:[#allocation2 + $0x6] sm:$0xff]
    %v165 = vld [vmem:[#allocation2 + $0xe] sm:$0xff]
    %v166 = vld [vmem:[#allocation2 + $0x16] sm:$0xff]
    %v167 = vld [vmem:[#allocation2 + $0x1e] sm:$0xff]
    %v168 = vld [vmem:[#allocation2 + $0x3e] sm:$0xff]
    %v169 = vld [vmem:[#allocation2 + $0x46] sm:$0xff]
    %v170 = vld [vmem:[#allocation2 + $0x4e] sm:$0xff]
    %v171 = vld [vmem:[#allocation2 + $0x56] sm:$0xff]
    %v172 = vadd.f32 %v156, %v164
    %v173 = vadd.f32 %v157, %v165
    %v174 = vadd.f32 %v158, %v166
    %v175 = vadd.f32 %v159, %v167
    %v176 = vadd.f32 %v160, %v168
    %v177 = vadd.f32 %v161, %v169
    %v178 = vadd.f32 %v162, %v170
    %v179 = vadd.f32 %v163, %v171
    %v180 = vld [vmem:[#allocation2 + $0x7] sm:$0xff]
    %v181 = vld [vmem:[#allocation2 + $0xf] sm:$0xff]
    %v182 = vld [vmem:[#allocation2 + $0x17] sm:$0xff]
    %v183 = vld [vmem:[#allocation2 + $0x1f] sm:$0xff]
    %v184 = vld [vmem:[#allocation2 + $0x3f] sm:$0xff]
    %v185 = vld [vmem:[#allocation2 + $0x47] sm:$0xff]
    %v186 = vld [vmem:[#allocation2 + $0x4f] sm:$0xff]
    %v187 = vld [vmem:[#allocation2 + $0x57] sm:$0xff]
    %v188 = vadd.f32 %v172, %v180
    %v189 = vadd.f32 %v173, %v181
    %v190 = vadd.f32 %v174, %v182
    %v191 = vadd.f32 %v175, %v183
    %v192 = vadd.f32 %v176, %v184
    %v193 = vadd.f32 %v177, %v185
    %v194 = vadd.f32 %v178, %v186
    %v195 = vadd.f32 %v179, %v187
    %v196 = vld [vmem:[#allocation2 + $0x20] sm:$0xff]
    %v197 = vld [vmem:[#allocation2 + $0x58] sm:$0xff]
    %v198 = vadd.f32 %v188, %v69
    %v199 = vadd.f32 %v189, %v70
    %v200 = vadd.f32 %v190, %v71
    %v201 = vadd.f32 %v191, %v196
    %v202 = vadd.f32 %v192, %v73
    %v203 = vadd.f32 %v193, %v74
    %v204 = vadd.f32 %v194, %v75
    %v205 = vadd.f32 %v195, %v197
    %v206 = vld [vmem:[#allocation2 + $0x21] sm:$0xff]
    %v207 = vld [vmem:[#allocation2 + $0x59] sm:$0xff]
    %v208 = vadd.f32 %v198, %v85
    %v209 = vadd.f32 %v199, %v86
    %v210 = vadd.f32 %v200, %v87
    %v211 = vadd.f32 %v201, %v206
    %v212 = vadd.f32 %v202, %v89
    %v213 = vadd.f32 %v203, %v90
    %v214 = vadd.f32 %v204, %v91
    %v215 = vadd.f32 %v205, %v207
    %v216 = vld [vmem:[#allocation2 + $0x22] sm:$0xff]
    %v217 = vld [vmem:[#allocation2 + $0x5a] sm:$0xff]
    %v218 = vadd.f32 %v208, %v101
    %v219 = vadd.f32 %v209, %v102
    %v220 = vadd.f32 %v210, %v103
    %v221 = vadd.f32 %v211, %v216
    %v222 = vadd.f32 %v212, %v105
    %v223 = vadd.f32 %v213, %v106
    %v224 = vadd.f32 %v214, %v107
    %v225 = vadd.f32 %v215, %v217
    %v226 = vld [vmem:[#allocation2 + $0x23] sm:$0xff]
    %v227 = vld [vmem:[#allocation2 + $0x5b] sm:$0xff]
    %v228 = vadd.f32 %v218, %v117
    %v229 = vadd.f32 %v219, %v118
    %v230 = vadd.f32 %v220, %v119
    %v231 = vadd.f32 %v221, %v226
    %v232 = vadd.f32 %v222, %v121
    %v233 = vadd.f32 %v223, %v122
    %v234 = vadd.f32 %v224, %v123
    %v235 = vadd.f32 %v225, %v227
    %v236 = vld [vmem:[#allocation2 + $0x24] sm:$0xff]
    %v237 = vld [vmem:[#allocation2 + $0x5c] sm:$0xff]
    %v238 = vadd.f32 %v228, %v133
    %v239 = vadd.f32 %v229, %v134
    %v240 = vadd.f32 %v230, %v135
    %v241 = vadd.f32 %v231, %v236
    %v242 = vadd.f32 %v232, %v137
    %v243 = vadd.f32 %v233, %v138
    %v244 = vadd.f32 %v234, %v139
    %v245 = vadd.f32 %v235, %v237
    %v246 = vld [vmem:[#allocation2 + $0x25] sm:$0xff]
    %v247 = vld [vmem:[#allocation2 + $0x5d] sm:$0xff]
    %v248 = vadd.f32 %v238, %v149
    %v249 = vadd.f32 %v239, %v150
    %v250 = vadd.f32 %v240, %v151
    %v251 = vadd.f32 %v241, %v246
    %v252 = vadd.f32 %v242, %v153
    %v253 = vadd.f32 %v243, %v154
    %v254 = vadd.f32 %v244, %v155
    %v255 = vadd.f32 %v245, %v247
    %v256 = vld [vmem:[#allocation2 + $0x26] sm:$0xff]
    %v257 = vld [vmem:[#allocation2 + $0x5e] sm:$0xff]
    %v258 = vadd.f32 %v248, %v165
    %v259 = vadd.f32 %v249, %v166
    %v260 = vadd.f32 %v250, %v167
    %v261 = vadd.f32 %v251, %v256
    %v262 = vadd.f32 %v252, %v169
    %v263 = vadd.f32 %v253, %v170
    %v264 = vadd.f32 %v254, %v171
    %v265 = vadd.f32 %v255, %v257
    %v266 = vld [vmem:[#allocation2 + $0x27] sm:$0xff]
    %v267 = vld [vmem:[#allocation2 + $0x5f] sm:$0xff]
    %v268 = vadd.f32 %v258, %v181
    %v269 = vadd.f32 %v259, %v182
    %v270 = vadd.f32 %v260, %v183
    %v271 = vadd.f32 %v261, %v266
    %v272 = vadd.f32 %v262, %v185
    %v273 = vadd.f32 %v263, %v186
    %v274 = vadd.f32 %v264, %v187
    %v275 = vadd.f32 %v265, %v267
    %v276 = vld [vmem:[#allocation2 + $0x28] sm:$0xff]
    %v277 = vld [vmem:[#allocation2 + $0x60] sm:$0xff]
    %v278 = vadd.f32 %v268, %v70
    %v279 = vadd.f32 %v269, %v71
    %v280 = vadd.f32 %v270, %v196
    %v281 = vadd.f32 %v271, %v276
    %v282 = vadd.f32 %v272, %v74
    %v283 = vadd.f32 %v273, %v75
    %v284 = vadd.f32 %v274, %v197
    %v285 = vadd.f32 %v275, %v277
    %v286 = vld [vmem:[#allocation2 + $0x29] sm:$0xff]
    %v287 = vld [vmem:[#allocation2 + $0x61] sm:$0xff]
    %v288 = vadd.f32 %v278, %v86
    %v289 = vadd.f32 %v279, %v87
    %v290 = vadd.f32 %v280, %v206
    %v291 = vadd.f32 %v281, %v286
    %v292 = vadd.f32 %v282, %v90
    %v293 = vadd.f32 %v283, %v91
    %v294 = vadd.f32 %v284, %v207
    %v295 = vadd.f32 %v285, %v287
    %v296 = vld [vmem:[#allocation2 + $0x2a] sm:$0xff]
    %v297 = vld [vmem:[#allocation2 + $0x62] sm:$0xff]
    %v298 = vadd.f32 %v288, %v102
    %v299 = vadd.f32 %v289, %v103
    %v300 = vadd.f32 %v290, %v216
    %v301 = vadd.f32 %v291, %v296
    %v302 = vadd.f32 %v292, %v106
    %v303 = vadd.f32 %v293, %v107
    %v304 = vadd.f32 %v294, %v217
    %v305 = vadd.f32 %v295, %v297
    %v306 = vld [vmem:[#allocation2 + $0x2b] sm:$0xff]
    %v307 = vld [vmem:[#allocation2 + $0x63] sm:$0xff]
    %v308 = vadd.f32 %v298, %v118
    %v309 = vadd.f32 %v299, %v119
    %v310 = vadd.f32 %v300, %v226
    %v311 = vadd.f32 %v301, %v306
    %v312 = vadd.f32 %v302, %v122
    %v313 = vadd.f32 %v303, %v123
    %v314 = vadd.f32 %v304, %v227
    %v315 = vadd.f32 %v305, %v307
    %v316 = vld [vmem:[#allocation2 + $0x2c] sm:$0xff]
    %v317 = vld [vmem:[#allocation2 + $0x64] sm:$0xff]
    %v318 = vadd.f32 %v308, %v134
    %v319 = vadd.f32 %v309, %v135
    %v320 = vadd.f32 %v310, %v236
    %v321 = vadd.f32 %v311, %v316
    %v322 = vadd.f32 %v312, %v138
    %v323 = vadd.f32 %v313, %v139
    %v324 = vadd.f32 %v314, %v237
    %v325 = vadd.f32 %v315, %v317
    %v326 = vld [vmem:[#allocation2 + $0x2d] sm:$0xff]
    %v327 = vld [vmem:[#allocation2 + $0x65] sm:$0xff]
    %v328 = vadd.f32 %v318, %v150
    %v329 = vadd.f32 %v319, %v151
    %v330 = vadd.f32 %v320, %v246
    %v331 = vadd.f32 %v321, %v326
    %v332 = vadd.f32 %v322, %v154
    %v333 = vadd.f32 %v323, %v155
    %v334 = vadd.f32 %v324, %v247
    %v335 = vadd.f32 %v325, %v327
    %v336 = vld [vmem:[#allocation2 + $0x2e] sm:$0xff]
    %v337 = vld [vmem:[#allocation2 + $0x66] sm:$0xff]
    %v338 = vadd.f32 %v328, %v166
    %v339 = vadd.f32 %v329, %v167
    %v340 = vadd.f32 %v330, %v256
    %v341 = vadd.f32 %v331, %v336
    %v342 = vadd.f32 %v332, %v170
    %v343 = vadd.f32 %v333, %v171
    %v344 = vadd.f32 %v334, %v257
    %v345 = vadd.f32 %v335, %v337
    %v346 = vld [vmem:[#allocation2 + $0x2f] sm:$0xff]
    %v347 = vld [vmem:[#allocation2 + $0x67] sm:$0xff]
    %v348 = vadd.f32 %v338, %v182
    %v349 = vadd.f32 %v339, %v183
    %v350 = vadd.f32 %v340, %v266
    %v351 = vadd.f32 %v341, %v346
    %v352 = vadd.f32 %v342, %v186
    %v353 = vadd.f32 %v343, %v187
    %v354 = vadd.f32 %v344, %v267
    %v355 = vadd.f32 %v345, %v347
    %v356 = vld [vmem:[#allocation2 + $0x30] sm:$0xff]
    %v357 = vld [vmem:[#allocation2 + $0x68] sm:$0xff]
    %v358 = vadd.f32 %v348, %v71
    %v359 = vadd.f32 %v349, %v196
    %v360 = vadd.f32 %v350, %v276
    %v361 = vadd.f32 %v351, %v356
    %v362 = vadd.f32 %v352, %v75
    %v363 = vadd.f32 %v353, %v197
    %v364 = vadd.f32 %v354, %v277
    %v365 = vadd.f32 %v355, %v357
    %v366 = vmul.f32 %v358, 0.04
    %v367 = vmul.f32 %v359, 0.04
    %v368 = vmul.f32 %v360, 0.04
    %v369 = vmul.f32 %v361, 0.04
    %v370 = vmul.f32 %v362, 0.04
    %v371 = vmul.f32 %v363, 0.04
    %v372 = vmul.f32 %v364, 0.04
    %v373 = vmul.f32 %v365, 0.04
    %374 = vst.msk [vmem:[#allocation6] sm:$0xff] %vm34, %v366
    %375 = vst.msk [vmem:[#allocation6 + $0x8] sm:$0xff] %vm34, %v367
    %376 = vst.msk [vmem:[#allocation6 + $0x10] sm:$0xff] %vm34, %v368
    %377 = vst.msk [vmem:[#allocation6 + $0x18] sm:$0xff] %vm34, %v369
    %378 = vst.msk [vmem:[#allocation6 + $0x20] sm:$0xff] %vm34, %v370
    %379 = vst.msk [vmem:[#allocation6 + $0x28] sm:$0xff] %vm34, %v371
    %380 = vst.msk [vmem:[#allocation6 + $0x30] sm:$0xff] %vm34, %v372
    %381 = vst.msk [vmem:[#allocation6 + $0x38] sm:$0xff] %vm34, %v373
    %v382 = vsub.f32 %v26, %v366
    %v383 = vsub.f32 %v27, %v367
    %v384 = vsub.f32 %v28, %v368
    %v385 = vsub.f32 %v29, %v369
    %v386 = vsub.f32 %v30, %v370
    %v387 = vsub.f32 %v31, %v371
    %v388 = vsub.f32 %v32, %v372
    %v389 = vsub.f32 %v33, %v373
    %390 = vst.msk [vmem:[#allocation7] sm:$0xff] %vm34, %v382
    %391 = vst.msk [vmem:[#allocation7 + $0x8] sm:$0xff] %vm34, %v383
    %392 = vst.msk [vmem:[#allocation7 + $0x10] sm:$0xff] %vm34, %v384
    %393 = vst.msk [vmem:[#allocation7 + $0x18] sm:$0xff] %vm34, %v385
    %394 = vst.msk [vmem:[#allocation7 + $0x20] sm:$0xff] %vm34, %v386
    %395 = vst.msk [vmem:[#allocation7 + $0x28] sm:$0xff] %vm34, %v387
    %396 = vst.msk [vmem:[#allocation7 + $0x30] sm:$0xff] %vm34, %v388
    %397 = vst.msk [vmem:[#allocation7 + $0x38] sm:$0xff] %vm34, %v389
    // Predicated region
    $region10: #{tpu_custom_call.1} parent=1 // pred_check
      _
    $region11: #{tpu_custom_call.1} parent=1 // pred_check_branch
      %399 = sbr.rel (0) target = $region13
    $region12: #{tpu_custom_call.1} parent=1 // pred_region
      %s401 = ssub.s32 1024, 1024
      %402 = vsyncadd [#allocation5], %s401
      %s403 = sshll.u32 [#allocation6], 4
      %s404 = int_to_ptr.vmem [resolvable:$true] %s403
      %409 = dma.vmem_to_hbm [thread:$0]  %s404, 1024, %s1, [#allocation5], 128, 128, 8
    $region13: #{tpu_custom_call.1} parent=1 // pred_fallthru
      _
    // Predicated region
    $region14: #{tpu_custom_call.1} parent=1 // pred_check
      _
    $region15: #{tpu_custom_call.1} parent=1 // pred_check_branch
      %411 = sbr.rel (0) target = $region17
    $region16: #{tpu_custom_call.1} parent=1 // pred_region
      %s413 = ssub.s32 1024, 1024
      %414 = vsyncadd [#allocation8], %s413
      %s415 = sshll.u32 [#allocation7], 4
      %s416 = int_to_ptr.vmem [resolvable:$true] %s415
      %421 = dma.vmem_to_hbm [thread:$0]  %s416, 1024, %s2, [#allocation8], 128, 128, 8
    $region17: #{tpu_custom_call.1} parent=1 // pred_fallthru
      _
    // Predicated region
    $region18: #{tpu_custom_call.1} parent=1 // pred_check
      _
    $region19: #{tpu_custom_call.1} parent=1 // pred_check_branch
      %423 = sbr.rel (0) target = $region21
    $region20: #{tpu_custom_call.1} parent=1 // pred_region
      %424 = dma.done [#allocation5], 1024
    $region21: #{tpu_custom_call.1} parent=1 // pred_fallthru
      _
    // Predicated region
    $region22: #{tpu_custom_call.1} parent=1 // pred_check
      _
    $region23: #{tpu_custom_call.1} parent=1 // pred_check_branch
      %426 = sbr.rel (0) target = $region25
    $region24: #{tpu_custom_call.1} parent=1 // pred_region
      %427 = dma.done [#allocation8], 1024
    $region25: #{tpu_custom_call.1} parent=1 // pred_fallthru
      _
    %428 = vsyncpa [#allocation4], 1
    %429 = vsyncpa [#allocation5], 1
    %430 = vsyncpa [#allocation8], 1

</llo_original>
